<compile_context>
chip_gen: v6e
topology: v6e:2x2x1
jax: 0.10.0
libtpu: 0.0.40
codegen_flags: <defaults>
</compile_context>

<pallas_src>
import functools
import math

import jax
import jax.numpy as jnp
from jax import lax
from jax.experimental import pallas as pl
from jax.experimental.pallas import tpu as pltpu


def _round_up(x, m):
    return (x + m - 1) // m * m


def _supcon_kernel(lab_a_ref, lab_c_ref, xa_ref, xc_ref, out_ref,
                   m_run, d_run, p_sum, c_sum,
                   *, n_contrast, n_anchor, block_q, block_k):
    # lab_a_ref : [1, TQ]  int32  anchor labels (lane-dense)
    # lab_c_ref : [TK, 1]  int32  contrast labels (sublane)
    # xa_ref    : [TQ, D]  bf16   anchor features   (pre-scaled by 1/sqrt(T))
    # xc_ref    : [TK, D]  bf16   contrast features (pre-scaled by 1/sqrt(T))
    # out_ref   : [1, TQ]  f32    mean_log_prob_pos per anchor row (lane-dense)
    # scratch   : [1, TQ]  f32    running max / denom / pos-weighted sum / pos count
    r = pl.program_id(0)          # anchor (row) tile      -- "parallel"
    c = pl.program_id(1)          # contrast (column) tile -- reduction axis

    @pl.when(c == 0)
    def _init():
        m_run[...] = jnp.full_like(m_run, -jnp.inf)
        d_run[...] = jnp.zeros_like(d_run)
        p_sum[...] = jnp.zeros_like(p_sum)
        c_sum[...] = jnp.zeros_like(c_sum)

    # s_t[k, q] = <x_k, x_q> / T  (temperature folded into the features).
    # Transposed orientation: anchors in the lane dim -> lane-dense reductions.
    s_t = lax.dot_general(
        xc_ref[...], xa_ref[...],
        dimension_numbers=(((1,), (1,)), ((), ())),
        preferred_element_type=jnp.float32)                          # [TK, TQ] f32

    row_ids = r * block_q + lax.broadcasted_iota(jnp.int32, (1, block_q), 1)
    col_ids = c * block_k + lax.broadcasted_iota(jnp.int32, (block_k, 1), 0)

    # logits_mask: exclude self-contrast and padded contrast columns.
    lmask = (col_ids < n_contrast) & (col_ids != row_ids)            # [TK, TQ]
    # positive mask: same label, minus self / padding.
    pos = lmask & (lab_c_ref[...] == lab_a_ref[...])                 # [TK, TQ]

    s_m = jnp.where(lmask, s_t, -jnp.inf)                            # masked scores

    # Online log-sum-exp over the contrast axis (sublane axis 0).
    m_new = jnp.maximum(m_run[...], jnp.max(s_m, axis=0, keepdims=True))
    alpha = jnp.exp(m_run[...] - m_new)
    d_run[...] = alpha * d_run[...] + jnp.sum(jnp.exp(s_m - m_new),
                                              axis=0, keepdims=True)
    m_run[...] = m_new

    posf = pos.astype(jnp.float32)
    p_sum[...] += jnp.sum(jnp.where(pos, s_m, 0.0), axis=0, keepdims=True)
    c_sum[...] += jnp.sum(posf, axis=0, keepdims=True)

    @pl.when(c == pl.num_programs(1) - 1)
    def _finalize():
        # logsumexp_i over j != i (padding excluded)
        lse = m_run[...] + jnp.log(d_run[...])
        # mean_log_prob_pos_i = (sum_j m_ij*s_ij - C_i*lse_i) / C_i
        # NOTE: a real row with zero positives gives 0/0 = NaN, same as PyTorch.
        inv_cnt = pl.reciprocal(c_sum[...], approx=True)
        mlpp = (p_sum[...] - c_sum[...] * lse) * inv_cnt
        # zero out padded anchor rows so the host-side sum/mean is exact.
        out_ref[...] = jnp.where(row_ids < n_anchor, mlpp, 0.0)


def supcon_loss_pallas(features, labels=None, mask=None, temperature=0.07,
                       contrast_mode='all', block_q=128, block_k=512,
                       interpret=False):
    """JAX/Pallas equivalent of SupConLoss.forward (labels / SimCLR paths)."""
    if features.ndim < 3:
        raise ValueError('`features` needs to be [bsz, n_views, ...]')
    if features.ndim > 3:
        features = features.reshape(features.shape[0], features.shape[1], -1)
    bsz, n_views, dim = features.shape

    if labels is not None and mask is not None:
        raise ValueError('Cannot define both `labels` and `mask`')
    if mask is not None:
        # TODO(synk): arbitrary user-supplied [bsz, bsz] masks need an NxN mask-tile
        # input variant; the fused kernel builds the mask from labels in-kernel.
        raise NotImplementedError('explicit `mask` is not supported by the Pallas kernel')
    if labels is None:
        base_labels = jnp.arange(bsz, dtype=jnp.int32)        # SimCLR: eye(bsz)
    else:
        base_labels = jnp.asarray(labels).reshape(-1).astype(jnp.int32)
        if base_labels.shape[0] != bsz:
            raise ValueError('Num of labels does not match num of features')

    n_contrast = bsz * n_views
    if contrast_mode == 'all':
        n_anchor = n_contrast
    elif contrast_mode == 'one':
        # anchors are exactly the first `bsz` rows of the view-major contrast stack
        n_anchor = bsz
    else:
        raise ValueError('Unknown mode: {}'.format(contrast_mode))

    # contrast_feature = torch.cat(torch.unbind(features, 1), 0): view index outermost.
    feat = jnp.transpose(features, (1, 0, 2)).reshape(n_contrast, dim)
    # Fold temperature into both matmul operands: (x/sqrt(T)) @ (x/sqrt(T)).T = x@x.T / T
    feat = (feat.astype(jnp.float32) * (1.0 / math.sqrt(float(temperature)))
            ).astype(jnp.bfloat16)
    lab_full = jnp.tile(base_labels, n_views)                 # [N], view-major

    # ---- tile sizes & padding ------------------------------------------------
    assert block_q % 128 == 0 and block_k % 128 == 0
    n128 = _round_up(n_contrast, 128)
    bq = min(block_q, n128)
    bk = min(block_k, n128)
    n_pad = _round_up(n_contrast, math.lcm(bq, bk))           # contrast (column) pad
    grid_r = _round_up(n_anchor, bq) // bq
    grid_c = n_pad // bk
    na_pad = grid_r * bq                                      # anchor (row/output) pad

    feat = jnp.pad(feat, ((0, n_pad - n_contrast), (0, 0)))
    lab_lane = jnp.pad(lab_full, (0, n_pad - n_contrast),
                       constant_values=-1).reshape(1, n_pad)   # [1, Np] lane-dense
    lab_col = lab_lane.reshape(n_pad, 1)                       # [Np, 1]

    kernel = functools.partial(
        _supcon_kernel, n_contrast=n_contrast, n_anchor=n_anchor,
        block_q=bq, block_k=bk)

    cost = pl.CostEstimate(
        flops=2 * na_pad * n_pad * dim + 8 * na_pad * n_pad,
        transcendentals=na_pad * n_pad,
        bytes_accessed=(grid_r * (n_pad + bq) * dim * 2        # bf16 feature tiles
                        + grid_r * (n_pad + bq) * 4            # label tiles
                        + na_pad * 4))                         # per-row output

    out = pl.pallas_call(
        kernel,
        out_shape=jax.ShapeDtypeStruct((1, na_pad), jnp.float32),
        grid_spec=pltpu.PrefetchScalarGridSpec(
            num_scalar_prefetch=0,
            grid=(grid_r, grid_c),
            in_specs=[
                pl.BlockSpec((1, bq), lambda r, c: (0, r)),      # anchor labels
                pl.BlockSpec((bk, 1), lambda r, c: (c, 0)),      # contrast labels
                pl.BlockSpec((bq, dim), lambda r, c: (r, 0)),    # anchor features
                pl.BlockSpec((bk, dim), lambda r, c: (c, 0)),    # contrast features
            ],
            out_specs=pl.BlockSpec((1, bq), lambda r, c: (0, r)),
            scratch_shapes=[pltpu.VMEM((1, bq), jnp.float32)] * 4,
        ),
        compiler_params=pltpu.CompilerParams(
            dimension_semantics=("parallel", "arbitrary"),
            vmem_limit_bytes=32 * 1024 * 1024),
        cost_estimate=cost,
        interpret=interpret,
    )(lab_lane, lab_col, feat, feat)

    # padded anchor rows were written as 0, so a plain sum / n_anchor is exact.
    return -jnp.sum(out) / n_anchor


def supcon_loss_ref(features, labels=None, temperature=0.07, contrast_mode='all'):
    """Pure-JAX f32 reference mirroring the PyTorch module."""
    bsz, n_views, dim = features.shape
    if labels is None:
        base_mask = jnp.eye(bsz, dtype=jnp.float32)
    else:
        labels = jnp.asarray(labels).reshape(-1, 1)
        base_mask = (labels == labels.T).astype(jnp.float32)
    contrast = jnp.transpose(features, (1, 0, 2)).reshape(bsz * n_views, dim)
    if contrast_mode == 'one':
        anchor, anchor_count = contrast[:bsz], 1
    else:
        anchor, anchor_count = contrast, n_views
    n_c = bsz * n_views
    n_a = bsz * anchor_count
    s = anchor @ contrast.T / temperature
    logits = s - jnp.max(s, axis=1, keepdims=True)
    m = jnp.tile(base_mask, (anchor_count, n_views))
    lmask = jnp.ones((n_a, n_c), jnp.float32).at[
        jnp.arange(n_a), jnp.arange(n_a)].set(0.0)
    m = m * lmask
    exp_logits = jnp.exp(logits) * lmask
    log_prob = logits - jnp.log(exp_logits.sum(1, keepdims=True))
    mlpp = (m * log_prob).sum(1) / m.sum(1)
    return -mlpp.mean()


if __name__ == "__main__":
    key = jax.random.PRNGKey(0)
    k1, k2, k3, k4 = jax.random.split(key, 4)

    # Small shapes consistent with the module: features [bsz, n_views, dim].
    bsz, n_views, dim = 8, 2, 32
    feats = jax.random.normal(k1, (bsz, n_views, dim), dtype=jnp.float32)
    feats = feats / jnp.linalg.norm(feats, axis=-1, keepdims=True)
    labels = jax.random.randint(k2, (bsz,), 0, 4)

    # bf16 matmul operands (perf review) vs f32 reference -> tolerance covers
    # the bf16 product rounding at these magnitudes.
    tol = dict(atol=5e-2, rtol=2e-2)

    # 1) supervised, contrast_mode='all'
    loss = jax.block_until_ready(supcon_loss_pallas(feats, labels=labels))
    ref = supcon_loss_ref(feats, labels=labels)
    assert bool(jnp.isfinite(loss)), loss
    assert jnp.allclose(loss, ref, **tol), (loss, ref)

    # 2) supervised, contrast_mode='one'
    loss1 = jax.block_until_ready(
        supcon_loss_pallas(feats, labels=labels, contrast_mode='one'))
    ref1 = supcon_loss_ref(feats, labels=labels, contrast_mode='one')
    assert jnp.allclose(loss1, ref1, **tol), (loss1, ref1)

    # 3) SimCLR (labels=None, mask=None)
    loss2 = jax.block_until_ready(supcon_loss_pallas(feats))
    ref2 = supcon_loss_ref(feats)
    assert jnp.allclose(loss2, ref2, **tol), (loss2, ref2)

    # 4) multi-tile grid (2 row tiles x 2 column tiles) to exercise the online
    #    accumulation across column tiles and the parallel row axis.
    bsz2 = 96
    feats2 = jax.random.normal(k3, (bsz2, n_views, dim), dtype=jnp.float32)
    feats2 = feats2 / jnp.linalg.norm(feats2, axis=-1, keepdims=True)
    labels2 = jax.random.randint(k4, (bsz2,), 0, 10)
    loss3 = jax.block_until_ready(
        supcon_loss_pallas(feats2, labels=labels2, block_q=128, block_k=128))
    ref3 = supcon_loss_ref(feats2, labels=labels2)
    assert jnp.allclose(loss3, ref3, **tol), (loss3, ref3)

    print("KERNEL_OK")
</pallas_src>

<mosaic_0001>
module attributes {stable_mosaic.version = 11 : i64} {
  func.func @_supcon_kernel(%arg0: i32, %arg1: i32, %arg2: memref<1x128xi32, #tpu.memory_space<vmem>>, %arg3: memref<128x1xi32, #tpu.memory_space<vmem>>, %arg4: memref<128x32xbf16, #tpu.memory_space<vmem>>, %arg5: memref<128x32xbf16, #tpu.memory_space<vmem>>, %arg6: memref<1x128xf32, #tpu.memory_space<vmem>>, %arg7: memref<1x128xf32, #tpu.memory_space<vmem>>, %arg8: memref<1x128xf32, #tpu.memory_space<vmem>>, %arg9: memref<1x128xf32, #tpu.memory_space<vmem>>, %arg10: memref<1x128xf32, #tpu.memory_space<vmem>>) attributes {dimension_semantics = [#tpu.dimension_semantics<parallel>, #tpu.dimension_semantics<arbitrary>], iteration_bounds = array<i64: 1, 1>, scalar_prefetch = 0 : i64, scratch_operands = 4 : i64, tpu.core_type = #tpu.core_type<tc>, window_params = [{transform_indices = @transform_0, window_bounds = array<i64: 1, 128>}, {transform_indices = @transform_1, window_bounds = array<i64: 128, 1>}, {transform_indices = @transform_2, window_bounds = array<i64: 128, 32>}, {transform_indices = @transform_3, window_bounds = array<i64: 128, 32>}, {transform_indices = @transform_4, window_bounds = array<i64: 1, 128>}]} {
    %c0_i32 = arith.constant 0 : i32
    %0 = arith.cmpi eq, %arg1, %c0_i32 : i32
    %1 = arith.extui %0 : i1 to i32
    %c0_i32_0 = arith.constant 0 : i32
    %2 = arith.cmpi ne, %1, %c0_i32_0 : i32
    scf.if %2 {
      %cst_35 = arith.constant 0xFF800000 : f32
      %63 = vector.broadcast %cst_35 : f32 to vector<1x128xf32>
      %c0_36 = arith.constant 0 : index
      %c0_37 = arith.constant 0 : index
      %64 = vector.load %arg7[%c0_36, %c0_37] : memref<1x128xf32, #tpu.memory_space<vmem>>, vector<1x128xf32>
      tpu.vector_store %arg7[%c0_36, %c0_37], %63 {strides = array<i32>} : memref<1x128xf32, #tpu.memory_space<vmem>>, vector<1x128xf32>,
      %cst_38 = arith.constant 0.000000e+00 : f32
      %65 = vector.broadcast %cst_38 : f32 to vector<1x128xf32>
      %c0_39 = arith.constant 0 : index
      %c0_40 = arith.constant 0 : index
      %66 = vector.load %arg8[%c0_39, %c0_40] : memref<1x128xf32, #tpu.memory_space<vmem>>, vector<1x128xf32>
      tpu.vector_store %arg8[%c0_39, %c0_40], %65 {strides = array<i32>} : memref<1x128xf32, #tpu.memory_space<vmem>>, vector<1x128xf32>,
      %cst_41 = arith.constant 0.000000e+00 : f32
      %67 = vector.broadcast %cst_41 : f32 to vector<1x128xf32>
      %c0_42 = arith.constant 0 : index
      %c0_43 = arith.constant 0 : index
      %68 = vector.load %arg9[%c0_42, %c0_43] : memref<1x128xf32, #tpu.memory_space<vmem>>, vector<1x128xf32>
      tpu.vector_store %arg9[%c0_42, %c0_43], %67 {strides = array<i32>} : memref<1x128xf32, #tpu.memory_space<vmem>>, vector<1x128xf32>,
      %cst_44 = arith.constant 0.000000e+00 : f32
      %69 = vector.broadcast %cst_44 : f32 to vector<1x128xf32>
      %c0_45 = arith.constant 0 : index
      %c0_46 = arith.constant 0 : index
      %70 = vector.load %arg10[%c0_45, %c0_46] : memref<1x128xf32, #tpu.memory_space<vmem>>, vector<1x128xf32>
      tpu.vector_store %arg10[%c0_45, %c0_46], %69 {strides = array<i32>} : memref<1x128xf32, #tpu.memory_space<vmem>>, vector<1x128xf32>,
    } else {
    }
    %c0 = arith.constant 0 : index
    %c0_1 = arith.constant 0 : index
    %3 = vector.load %arg5[%c0, %c0_1] : memref<128x32xbf16, #tpu.memory_space<vmem>>, vector<128x32xbf16>
    %c0_2 = arith.constant 0 : index
    %c0_3 = arith.constant 0 : index
    %4 = vector.load %arg4[%c0_2, %c0_3] : memref<128x32xbf16, #tpu.memory_space<vmem>>, vector<128x32xbf16>
    %cst = arith.constant dense<0.000000e+00> : vector<128x128xf32>
    %5 = tpu.matmul %3, %4, %cst {dimension_numbers = #tpu.dot_dimension_numbers<[1], [1], [0], [0], [0, 0, 1, 0], [], []>} : vector<128x32xbf16>, vector<128x32xbf16>, vector<128x128xf32> -> vector<128x128xf32>
    %c128_i32 = arith.constant 128 : i32
    %6 = arith.muli %arg0, %c128_i32 : i32
    %7 = tpu.iota {dimensions = array<i32: 1>} : vector<1x128xi32>
    %8 = vector.broadcast %6 : i32 to vector<1x128xi32>
    %9 = arith.addi %8, %7 : vector<1x128xi32>
    %c128_i32_4 = arith.constant 128 : i32
    %10 = arith.muli %arg1, %c128_i32_4 : i32
    %11 = tpu.iota {dimensions = array<i32: 0>} : vector<128x1xi32>
    %12 = vector.broadcast %10 : i32 to vector<128x1xi32>
    %13 = arith.addi %12, %11 : vector<128x1xi32>
    %c16_i32 = arith.constant 16 : i32
    %14 = vector.broadcast %c16_i32 : i32 to vector<128x1xi32>
    %15 = arith.cmpi slt, %13, %14 : vector<128x1xi32>
    %16 = vector.broadcast %13 : vector<128x1xi32> to vector<128x128xi32>
    %17 = vector.broadcast %9 : vector<1x128xi32> to vector<128x128xi32>
    %18 = arith.cmpi ne, %16, %17 : vector<128x128xi32>
    %19 = vector.broadcast %15 : vector<128x1xi1> to vector<128x128xi1>
    %20 = arith.andi %19, %18 : vector<128x128xi1>
    %c0_5 = arith.constant 0 : index
    %c0_6 = arith.constant 0 : index
    %21 = vector.load %arg3[%c0_5, %c0_6] : memref<128x1xi32, #tpu.memory_space<vmem>>, vector<128x1xi32>
    %c0_7 = arith.constant 0 : index
    %c0_8 = arith.constant 0 : index
    %22 = vector.load %arg2[%c0_7, %c0_8] : memref<1x128xi32, #tpu.memory_space<vmem>>, vector<1x128xi32>
    %23 = vector.broadcast %21 : vector<128x1xi32> to vector<128x128xi32>
    %24 = vector.broadcast %22 : vector<1x128xi32> to vector<128x128xi32>
    %25 = arith.cmpi eq, %23, %24 : vector<128x128xi32>
    %26 = arith.andi %20, %25 : vector<128x128xi1>
    %cst_9 = arith.constant 0xFF800000 : f32
    %27 = vector.broadcast %cst_9 : f32 to vector<128x128xf32>
    %28 = arith.select %20, %5, %27 : vector<128x128xi1>, vector<128x128xf32>
    %c0_10 = arith.constant 0 : index
    %c0_11 = arith.constant 0 : index
    %29 = vector.load %arg7[%c0_10, %c0_11] : memref<1x128xf32, #tpu.memory_space<vmem>>, vector<1x128xf32>
    %cst_12 = arith.constant dense<0xFF800000> : vector<128xf32>
    %30 = vector.multi_reduction <maximumf>, %28, %cst_12 [0] : vector<128x128xf32> to vector<128xf32>
    %31 = vector.shape_cast %30 : vector<128xf32> to vector<1x128xf32>
    %32 = arith.maximumf %29, %31 : vector<1x128xf32>
    %c0_13 = arith.constant 0 : index
    %c0_14 = arith.constant 0 : index
    %33 = vector.load %arg7[%c0_13, %c0_14] : memref<1x128xf32, #tpu.memory_space<vmem>>, vector<1x128xf32>
    %34 = arith.subf %33, %32 : vector<1x128xf32>
    %35 = math.exp %34 : vector<1x128xf32>
    %c0_15 = arith.constant 0 : index
    %c0_16 = arith.constant 0 : index
    %36 = vector.load %arg8[%c0_15, %c0_16] : memref<1x128xf32, #tpu.memory_space<vmem>>, vector<1x128xf32>
    %37 = arith.mulf %35, %36 : vector<1x128xf32>
    %38 = vector.broadcast %32 : vector<1x128xf32> to vector<128x128xf32>
    %39 = arith.subf %28, %38 : vector<128x128xf32>
    %40 = math.exp %39 : vector<128x128xf32>
    %cst_17 = arith.constant dense<0.000000e+00> : vector<128xf32>
    %41 = vector.multi_reduction <add>, %40, %cst_17 [0] : vector<128x128xf32> to vector<128xf32>
    %42 = vector.shape_cast %41 : vector<128xf32> to vector<1x128xf32>
    %43 = arith.addf %37, %42 : vector<1x128xf32>
    %c0_18 = arith.constant 0 : index
    %c0_19 = arith.constant 0 : index
    %44 = vector.load %arg8[%c0_18, %c0_19] : memref<1x128xf32, #tpu.memory_space<vmem>>, vector<1x128xf32>
    tpu.vector_store %arg8[%c0_18, %c0_19], %43 {strides = array<i32>} : memref<1x128xf32, #tpu.memory_space<vmem>>, vector<1x128xf32>,
    %c0_20 = arith.constant 0 : index
    %c0_21 = arith.constant 0 : index
    %45 = vector.load %arg7[%c0_20, %c0_21] : memref<1x128xf32, #tpu.memory_space<vmem>>, vector<1x128xf32>
    tpu.vector_store %arg7[%c0_20, %c0_21], %32 {strides = array<i32>} : memref<1x128xf32, #tpu.memory_space<vmem>>, vector<1x128xf32>,
    %46 = arith.extui %26 : vector<128x128xi1> to vector<128x128xi32>
    %47 = arith.sitofp %46 : vector<128x128xi32> to vector<128x128xf32>
    %c0_22 = arith.constant 0 : index
    %c0_23 = arith.constant 0 : index
    %48 = vector.load %arg9[%c0_22, %c0_23] : memref<1x128xf32, #tpu.memory_space<vmem>>, vector<1x128xf32>
    %cst_24 = arith.constant 0.000000e+00 : f32
    %49 = vector.broadcast %cst_24 : f32 to vector<128x128xf32>
    %50 = arith.select %26, %28, %49 : vector<128x128xi1>, vector<128x128xf32>
    %cst_25 = arith.constant dense<0.000000e+00> : vector<128xf32>
    %51 = vector.multi_reduction <add>, %50, %cst_25 [0] : vector<128x128xf32> to vector<128xf32>
    %52 = vector.shape_cast %51 : vector<128xf32> to vector<1x128xf32>
    %53 = arith.addf %48, %52 : vector<1x128xf32>
    %c0_26 = arith.constant 0 : index
    %c0_27 = arith.constant 0 : index
    %54 = vector.load %arg9[%c0_26, %c0_27] : memref<1x128xf32, #tpu.memory_space<vmem>>, vector<1x128xf32>
    tpu.vector_store %arg9[%c0_26, %c0_27], %53 {strides = array<i32>} : memref<1x128xf32, #tpu.memory_space<vmem>>, vector<1x128xf32>,
    %c0_28 = arith.constant 0 : index
    %c0_29 = arith.constant 0 : index
    %55 = vector.load %arg10[%c0_28, %c0_29] : memref<1x128xf32, #tpu.memory_space<vmem>>, vector<1x128xf32>
    %cst_30 = arith.constant dense<0.000000e+00> : vector<128xf32>
    %56 = vector.multi_reduction <add>, %47, %cst_30 [0] : vector<128x128xf32> to vector<128xf32>
    %57 = vector.shape_cast %56 : vector<128xf32> to vector<1x128xf32>
    %58 = arith.addf %55, %57 : vector<1x128xf32>
    %c0_31 = arith.constant 0 : index
    %c0_32 = arith.constant 0 : index
    %59 = vector.load %arg10[%c0_31, %c0_32] : memref<1x128xf32, #tpu.memory_space<vmem>>, vector<1x128xf32>
    tpu.vector_store %arg10[%c0_31, %c0_32], %58 {strides = array<i32>} : memref<1x128xf32, #tpu.memory_space<vmem>>, vector<1x128xf32>,
    %c0_i32_33 = arith.constant 0 : i32
    %60 = arith.cmpi eq, %arg1, %c0_i32_33 : i32
    %61 = arith.extui %60 : i1 to i32
    %c0_i32_34 = arith.constant 0 : i32
    %62 = arith.cmpi ne, %61, %c0_i32_34 : i32
    scf.if %62 {
      %c0_35 = arith.constant 0 : index
      %c0_36 = arith.constant 0 : index
      %63 = vector.load %arg7[%c0_35, %c0_36] : memref<1x128xf32, #tpu.memory_space<vmem>>, vector<1x128xf32>
      %c0_37 = arith.constant 0 : index
      %c0_38 = arith.constant 0 : index
      %64 = vector.load %arg8[%c0_37, %c0_38] : memref<1x128xf32, #tpu.memory_space<vmem>>, vector<1x128xf32>
      %65 = math.log %64 : vector<1x128xf32>
      %66 = arith.addf %63, %65 : vector<1x128xf32>
      %c0_39 = arith.constant 0 : index
      %c0_40 = arith.constant 0 : index
      %67 = vector.load %arg10[%c0_39, %c0_40] : memref<1x128xf32, #tpu.memory_space<vmem>>, vector<1x128xf32>
      %68 = tpu.reciprocal %67 {approx = true} : vector<1x128xf32> -> vector<1x128xf32>
      %c0_41 = arith.constant 0 : index
      %c0_42 = arith.constant 0 : index
      %69 = vector.load %arg9[%c0_41, %c0_42] : memref<1x128xf32, #tpu.memory_space<vmem>>, vector<1x128xf32>
      %c0_43 = arith.constant 0 : index
      %c0_44 = arith.constant 0 : index
      %70 = vector.load %arg10[%c0_43, %c0_44] : memref<1x128xf32, #tpu.memory_space<vmem>>, vector<1x128xf32>
      %71 = arith.mulf %70, %66 : vector<1x128xf32>
      %72 = arith.subf %69, %71 : vector<1x128xf32>
      %73 = arith.mulf %72, %68 : vector<1x128xf32>
      %c16_i32_45 = arith.constant 16 : i32
      %74 = vector.broadcast %c16_i32_45 : i32 to vector<1x128xi32>
      %75 = arith.cmpi slt, %9, %74 : vector<1x128xi32>
      %cst_46 = arith.constant 0.000000e+00 : f32
      %76 = vector.broadcast %cst_46 : f32 to vector<1x128xf32>
      %77 = arith.select %75, %73, %76 : vector<1x128xi1>, vector<1x128xf32>
      %c0_47 = arith.constant 0 : index
      %c0_48 = arith.constant 0 : index
      %78 = vector.load %arg6[%c0_47, %c0_48] : memref<1x128xf32, #tpu.memory_space<vmem>>, vector<1x128xf32>
      tpu.vector_store %arg6[%c0_47, %c0_48], %77 {strides = array<i32>} : memref<1x128xf32, #tpu.memory_space<vmem>>, vector<1x128xf32>,
    } else {
    }
    return
  }
  func.func @transform_0(%arg0: i32, %arg1: i32) -> (i32, i32) {
    %c0_i32 = arith.constant 0 : i32
    %c0_i32_0 = arith.constant 0 : i32
    return %c0_i32, %arg0 : i32, i32
  }
  func.func @transform_1(%arg0: i32, %arg1: i32) -> (i32, i32) {
    %c0_i32 = arith.constant 0 : i32
    %c0_i32_0 = arith.constant 0 : i32
    return %arg1, %c0_i32 : i32, i32
  }
  func.func @transform_2(%arg0: i32, %arg1: i32) -> (i32, i32) {
    %c0_i32 = arith.constant 0 : i32
    %c0_i32_0 = arith.constant 0 : i32
    return %arg0, %c0_i32 : i32, i32
  }
  func.func @transform_3(%arg0: i32, %arg1: i32) -> (i32, i32) {
    %c0_i32 = arith.constant 0 : i32
    %c0_i32_0 = arith.constant 0 : i32
    return %arg1, %c0_i32 : i32, i32
  }
  func.func @transform_4(%arg0: i32, %arg1: i32) -> (i32, i32) {
    %c0_i32 = arith.constant 0 : i32
    %c0_i32_0 = arith.constant 0 : i32
    return %c0_i32, %arg0 : i32, i32
  }
}

</mosaic_0001>

<llo_original>
// kernel: tpu_custom_call.1
$region0: #{tpu_custom_call.1}
  #allocation0 [shape = 'u32[]', space=smem, size = 0x4, offset = 0x4, fixed_abs, tag = 'smem constant byte address 0x4 - core index']
  #allocation1 [shape = 'u32[144,128]{1,0:T(1,128)}', space=vmem, size = 0x12000, scoped, tag = 'internal scratch']
  #allocation2 [shape = 'f32[1,128]{1,0:T(1,128)}', space=vmem, size = 0x200, scoped, tag = 'scratch operand']
  #allocation3 [shape = 'f32[1,128]{1,0:T(1,128)}', space=vmem, size = 0x200, scoped, tag = 'scratch operand']
  #allocation4 [shape = 'f32[1,128]{1,0:T(1,128)}', space=vmem, size = 0x200, scoped, tag = 'scratch operand']
  #allocation5 [shape = 'f32[1,128]{1,0:T(1,128)}', space=vmem, size = 0x200, scoped, tag = 'scratch operand']
  %s0 = inlined_call_operand.vmem [shape: s32[1,128], index: 0, kind: input, shape index: {}]
  %s1 = inlined_call_operand.vmem [shape: s32[128,1], index: 1, kind: input, shape index: {}]
  %s2 = inlined_call_operand.vmem [shape: bf16[128,32], index: 2, kind: input, shape index: {}]
  %s3 = inlined_call_operand.vmem [shape: bf16[128,32], index: 3, kind: input, shape index: {}]
  %s4 = inlined_call_operand.hbm [shape: f32[1,128], index: 4, kind: output, shape index: {}]
  %s5 = sld [smem:[#allocation0]]
  $region34: #{tpu_custom_call.1} parent=0
    _
  %s7 = ssub.s32 1, %s5
  %s8 = scalar_select 0, %s7, %s5
  $region1: #{tpu_custom_call.1} parent=0
    #allocation6 [shape = 'u8[512]{0}', space=vmem, size = 0x400, scoped, tag = 'output window, operand 0, single buffered']
    #allocation7 [shape = 's32[1]{0}', space=sflag, size = 0x4, scoped, tag = 'scoped memory for tpu_custom_call.1']
    %9 = vsyncpa [#allocation7], 0
    // Predicated region
    $region2: #{tpu_custom_call.1} parent=1 // pred_check
      _
    $region3: #{tpu_custom_call.1} parent=1 // pred_check_branch
      %11 = sbr.rel (0) target = $region5
    $region4: #{tpu_custom_call.1} parent=1 // pred_region
      _
    $region5: #{tpu_custom_call.1} parent=1 // pred_fallthru
      _
    // Predicated region
    $region6: #{tpu_custom_call.1} parent=1 // pred_check
      _
    $region7: #{tpu_custom_call.1} parent=1 // pred_check_branch
      %13 = sbr.rel (0) target = $region9
    $region8: #{tpu_custom_call.1} parent=1 // pred_region
      _
    $region9: #{tpu_custom_call.1} parent=1 // pred_fallthru
      _
    // Predicated region
    $region10: #{tpu_custom_call.1} parent=1 // pred_check
      _
    $region11: #{tpu_custom_call.1} parent=1 // pred_check_branch
      %15 = sbr.rel (0) target = $region13
    $region12: #{tpu_custom_call.1} parent=1 // pred_region
      _
    $region13: #{tpu_custom_call.1} parent=1 // pred_fallthru
      _
    // Predicated region
    $region14: #{tpu_custom_call.1} parent=1 // pred_check
      _
    $region15: #{tpu_custom_call.1} parent=1 // pred_check_branch
      %17 = sbr.rel (0) target = $region17
    $region16: #{tpu_custom_call.1} parent=1 // pred_region
      _
    $region17: #{tpu_custom_call.1} parent=1 // pred_fallthru
      _
    %p19 = scmp.eq.s32.totalorder 0, 0
    // Predicated region
    $region18: #{tpu_custom_call.1} parent=1 // pred_check
      %p20 = pneg %p19
    $region19: #{tpu_custom_call.1} parent=1 // pred_check_branch
      %22 = sbr.rel (%p20) target = $region21
    $region20: #{tpu_custom_call.1} parent=1 // pred_region
      %23 = vst [vmem:[#allocation2] sm:$0x1] -inf
      %24 = vst [vmem:[#allocation3] sm:$0x1] 0.0
      %25 = vst [vmem:[#allocation4] sm:$0x1] 0.0
      %26 = vst [vmem:[#allocation5] sm:$0x1] 0.0
    $region21: #{tpu_custom_call.1} parent=1 // pred_fallthru
      _
    %v27 = vld [vmem:[%s3] sm:$0xf]
    %v28 = vld [vmem:[%s3 + $0x4] sm:$0xf]
    %v29 = vld [vmem:[%s3 + $0x8] sm:$0xf]
    %v30 = vld [vmem:[%s3 + $0xc] sm:$0xf]
    %v31 = vld [vmem:[%s3 + $0x10] sm:$0xf]
    %v32 = vld [vmem:[%s3 + $0x14] sm:$0xf]
    %v33 = vld [vmem:[%s3 + $0x18] sm:$0xf]
    %v34 = vld [vmem:[%s3 + $0x1c] sm:$0xf]
    %v35 = vld [vmem:[%s3 + $0x20] sm:$0xf]
    %v36 = vld [vmem:[%s3 + $0x24] sm:$0xf]
    %v37 = vld [vmem:[%s3 + $0x28] sm:$0xf]
    %v38 = vld [vmem:[%s3 + $0x2c] sm:$0xf]
    %v39 = vld [vmem:[%s3 + $0x30] sm:$0xf]
    %v40 = vld [vmem:[%s3 + $0x34] sm:$0xf]
    %v41 = vld [vmem:[%s3 + $0x38] sm:$0xf]
    %v42 = vld [vmem:[%s3 + $0x3c] sm:$0xf]
    %v43 = vld [vmem:[%s2] sm:$0xf]
    %v44 = vld [vmem:[%s2 + $0x4] sm:$0xf]
    %v45 = vld [vmem:[%s2 + $0x8] sm:$0xf]
    %v46 = vld [vmem:[%s2 + $0xc] sm:$0xf]
    %v47 = vld [vmem:[%s2 + $0x10] sm:$0xf]
    %v48 = vld [vmem:[%s2 + $0x14] sm:$0xf]
    %v49 = vld [vmem:[%s2 + $0x18] sm:$0xf]
    %v50 = vld [vmem:[%s2 + $0x1c] sm:$0xf]
    %v51 = vld [vmem:[%s2 + $0x20] sm:$0xf]
    %v52 = vld [vmem:[%s2 + $0x24] sm:$0xf]
    %v53 = vld [vmem:[%s2 + $0x28] sm:$0xf]
    %v54 = vld [vmem:[%s2 + $0x2c] sm:$0xf]
    %v55 = vld [vmem:[%s2 + $0x30] sm:$0xf]
    %v56 = vld [vmem:[%s2 + $0x34] sm:$0xf]
    %v57 = vld [vmem:[%s2 + $0x38] sm:$0xf]
    %v58 = vld [vmem:[%s2 + $0x3c] sm:$0xf]
    %v75 = vunpack.c.l.b16 %v27
    %v76 = vunpack.c.l.b16 %v28
    %v77 = vunpack.c.l.b16 %v29
    %v78 = vunpack.c.l.b16 %v30
    %v79 = vunpack.c.l.b16 %v31
    %v80 = vunpack.c.l.b16 %v32
    %v81 = vunpack.c.l.b16 %v33
    %v82 = vunpack.c.l.b16 %v34
    %v83 = vunpack.c.l.b16 %v35
    %v84 = vunpack.c.l.b16 %v36
    %v85 = vunpack.c.l.b16 %v37
    %v86 = vunpack.c.l.b16 %v38
    %v87 = vunpack.c.l.b16 %v39
    %v88 = vunpack.c.l.b16 %v40
    %v89 = vunpack.c.l.b16 %v41
    %v90 = vunpack.c.l.b16 %v42
    %v91 = vpack.c.b16 %v76, %v75
    %v92 = vpack.c.b16 %v78, %v77
    %v93 = vpack.c.b16 %v80, %v79
    %v94 = vpack.c.b16 %v82, %v81
    %v95 = vpack.c.b16 %v84, %v83
    %v96 = vpack.c.b16 %v86, %v85
    %v97 = vpack.c.b16 %v88, %v87
    %v98 = vpack.c.b16 %v90, %v89
    %v115 = vunpack.c.l.b16 %v43
    %v116 = vunpack.c.l.b16 %v44
    %v117 = vunpack.c.l.b16 %v45
    %v118 = vunpack.c.l.b16 %v46
    %v119 = vunpack.c.l.b16 %v47
    %v120 = vunpack.c.l.b16 %v48
    %v121 = vunpack.c.l.b16 %v49
    %v122 = vunpack.c.l.b16 %v50
    %v123 = vunpack.c.l.b16 %v51
    %v124 = vunpack.c.l.b16 %v52
    %v125 = vunpack.c.l.b16 %v53
    %v126 = vunpack.c.l.b16 %v54
    %v127 = vunpack.c.l.b16 %v55
    %v128 = vunpack.c.l.b16 %v56
    %v129 = vunpack.c.l.b16 %v57
    %v130 = vunpack.c.l.b16 %v58
    %v131 = vpack.c.b16 %v116, %v115
    %v132 = vpack.c.b16 %v118, %v117
    %v133 = vpack.c.b16 %v120, %v119
    %v134 = vpack.c.b16 %v122, %v121
    %v135 = vpack.c.b16 %v124, %v123
    %v136 = vpack.c.b16 %v126, %v125
    %v137 = vpack.c.b16 %v128, %v127
    %v138 = vpack.c.b16 %v130, %v129
    %vm139 = vcmask 261120
    %v141 = vsel %vm139, %v91, 0
    %v144 = vsel %vm139, %v92, 0
    %v147 = vsel %vm139, %v93, 0
    %v150 = vsel %vm139, %v94, 0
    %v153 = vsel %vm139, %v95, 0
    %v156 = vsel %vm139, %v96, 0
    %v159 = vsel %vm139, %v97, 0
    %v162 = vsel %vm139, %v98, 0
    %v165 = vsel %vm139, %v131, 0
    %v168 = vsel %vm139, %v132, 0
    %v171 = vsel %vm139, %v133, 0
    %v174 = vsel %vm139, %v134, 0
    %v177 = vsel %vm139, %v135, 0
    %v180 = vsel %vm139, %v136, 0
    %v183 = vsel %vm139, %v137, 0
    %v186 = vsel %vm139, %v138, 0
    %188 = vmatprep.subr.bf16.mxu0 0
    %189 = vmatpush1.bf16.xpose.msra.mxu0 %v186
    %190 = vmatprep.subr.bf16.mxu0 0
    %191 = vmatpush1.bf16.xpose.msra.mxu0 %v183
    %192 = vmatprep.subr.bf16.mxu0 0
    %193 = vmatpush1.bf16.xpose.msra.mxu0 %v180
    %194 = vmatprep.subr.bf16.mxu0 0
    %195 = vmatpush1.bf16.xpose.msra.mxu0 %v177
    %196 = vmatprep.subr.bf16.mxu0 0
    %197 = vmatpush1.bf16.xpose.msra.mxu0 %v174
    %198 = vmatprep.subr.bf16.mxu0 0
    %199 = vmatpush1.bf16.xpose.msra.mxu0 %v171
    %200 = vmatprep.subr.bf16.mxu0 0
    %201 = vmatpush1.bf16.xpose.msra.mxu0 %v168
    %202 = vmatprep.subr.bf16.mxu0 0
    %203 = vmatpush1.bf16.xpose.msra.mxu0 %v165
    %204 = vmatprep.subr.bf16.mxu0 0
    %205 = vmatpush2.bf16.xpose.msra.mxu0 0
    %206 = vmatprep.subr.bf16.mxu0 0
    %207 = vmatpush2.bf16.xpose.msra.mxu0 0
    %208 = vmatprep.subr.bf16.mxu0 0
    %209 = vmatpush2.bf16.xpose.msra.mxu0 0
    %210 = vmatprep.subr.bf16.mxu0 0
    %211 = vmatpush2.bf16.xpose.msra.mxu0 0
    %212 = vmatprep.subr.bf16.mxu0 0
    %213 = vmatpush2.bf16.xpose.msra.mxu0 0
    %214 = vmatprep.subr.bf16.mxu0 0
    %215 = vmatpush2.bf16.xpose.msra.mxu0 0
    %216 = vmatprep.subr.bf16.mxu0 0
    %217 = vmatpush2.bf16.xpose.msra.mxu0 0
    %218 = vmatprep.subr.bf16.mxu0 0
    %219 = vmatpush2.bf16.xpose.msra.mxu0 0
    %220 = vmatprep.mubr.bf16.mxu0 0
    %221 = vmatmul.mubr.bf16.gmra.mxu0 %v141
    %v222 = vpop.f32.mrf.mxu0
    %v223 = vadd.f32 0.0, %v222
    %v224 = vpop.f32.mrf.mxu0
    %v225 = vpop.f32.mrf.mxu0
    %v226 = vadd.f32 0.0, %v225
    %v227 = vpop.f32.mrf.mxu0
    %228 = vmatprep.mubr.bf16.mxu0 0
    %229 = vmatmul.mubr.bf16.gmra.mxu0 %v144
    %v230 = vpop.f32.mrf.mxu0
    %v231 = vadd.f32 0.0, %v230
    %v232 = vpop.f32.mrf.mxu0
    %v233 = vpop.f32.mrf.mxu0
    %v234 = vadd.f32 0.0, %v233
    %v235 = vpop.f32.mrf.mxu0
    %236 = vmatprep.mubr.bf16.mxu0 0
    %237 = vmatmul.mubr.bf16.gmra.mxu0 %v147
    %v238 = vpop.f32.mrf.mxu0
    %v239 = vadd.f32 0.0, %v238
    %v240 = vpop.f32.mrf.mxu0
    %v241 = vpop.f32.mrf.mxu0
    %v242 = vadd.f32 0.0, %v241
    %v243 = vpop.f32.mrf.mxu0
    %244 = vmatprep.mubr.bf16.mxu0 0
    %245 = vmatmul.mubr.bf16.gmra.mxu0 %v150
    %v246 = vpop.f32.mrf.mxu0
    %v247 = vadd.f32 0.0, %v246
    %v248 = vpop.f32.mrf.mxu0
    %v249 = vpop.f32.mrf.mxu0
    %v250 = vadd.f32 0.0, %v249
    %v251 = vpop.f32.mrf.mxu0
    %252 = vmatprep.mubr.bf16.mxu0 0
    %253 = vmatmul.mubr.bf16.gmra.mxu0 %v153
    %v254 = vpop.f32.mrf.mxu0
    %v255 = vadd.f32 0.0, %v254
    %v256 = vpop.f32.mrf.mxu0
    %v257 = vpop.f32.mrf.mxu0
    %v258 = vadd.f32 0.0, %v257
    %v259 = vpop.f32.mrf.mxu0
    %260 = vmatprep.mubr.bf16.mxu0 0
    %261 = vmatmul.mubr.bf16.gmra.mxu0 %v156
    %v262 = vpop.f32.mrf.mxu0
    %v263 = vadd.f32 0.0, %v262
    %v264 = vpop.f32.mrf.mxu0
    %v265 = vpop.f32.mrf.mxu0
    %v266 = vadd.f32 0.0, %v265
    %v267 = vpop.f32.mrf.mxu0
    %268 = vmatprep.mubr.bf16.mxu0 0
    %269 = vmatmul.mubr.bf16.gmra.mxu0 %v159
    %v270 = vpop.f32.mrf.mxu0
    %v271 = vadd.f32 0.0, %v270
    %v272 = vpop.f32.mrf.mxu0
    %v273 = vpop.f32.mrf.mxu0
    %v274 = vadd.f32 0.0, %v273
    %v275 = vpop.f32.mrf.mxu0
    %276 = vmatprep.mubr.bf16.mxu0 0
    %277 = vmatmul.mubr.bf16.gmra.mxu0 %v162
    %v278 = vpop.f32.mrf.mxu0
    %v279 = vadd.f32 0.0, %v278
    %v280 = vpop.f32.mrf.mxu0
    %v281 = vpop.f32.mrf.mxu0
    %v282 = vadd.f32 0.0, %v281
    %v283 = vpop.f32.mrf.mxu0
    %284 = vdwg.mxu0
    %s285 = smul.u32 0, 128
    %v286 = vlaneseq
    %v287 = vand.u32 %v286, 127
    %v288 = vstv %s285
    %v289 = vadd.s32 %v288, %v287
    %s290 = smul.u32 0, 128
    %v291 = vlaneseq
    %v292 = vshrl.u32 %v291, 7
    %v293 = vadd.s32 %v292, 8
    %v294 = vadd.s32 %v292, 16
    %v295 = vadd.s32 %v292, 24
    %v296 = vadd.s32 %v292, 32
    %v297 = vadd.s32 %v292, 40
    %v298 = vadd.s32 %v292, 48
    %v299 = vadd.s32 %v292, 56
    %v300 = vadd.s32 %v292, 64
    %v301 = vadd.s32 %v292, 72
    %v302 = vadd.s32 %v292, 80
    %v303 = vadd.s32 %v292, 88
    %v304 = vadd.s32 %v292, 96
    %v305 = vadd.s32 %v292, 104
    %v306 = vadd.s32 %v292, 112
    %v307 = vadd.s32 %v292, 120
    %v308 = vstv %s290
    %v309 = vadd.s32 %v308, %v292
    %v310 = vadd.s32 %v308, %v293
    %v311 = vadd.s32 %v308, %v294
    %v312 = vadd.s32 %v308, %v295
    %v313 = vadd.s32 %v308, %v296
    %v314 = vadd.s32 %v308, %v297
    %v315 = vadd.s32 %v308, %v298
    %v316 = vadd.s32 %v308, %v299
    %v317 = vadd.s32 %v308, %v300
    %v318 = vadd.s32 %v308, %v301
    %v319 = vadd.s32 %v308, %v302
    %v320 = vadd.s32 %v308, %v303
    %v321 = vadd.s32 %v308, %v304
    %v322 = vadd.s32 %v308, %v305
    %v323 = vadd.s32 %v308, %v306
    %v324 = vadd.s32 %v308, %v307
    %vm325 = vcmp.lt.s32.totalorder %v309, 16
    %vm326 = vcmp.lt.s32.totalorder %v310, 16
    %vm327 = vcmp.lt.s32.totalorder %v311, 16
    %vm328 = vcmp.lt.s32.totalorder %v312, 16
    %vm329 = vcmp.lt.s32.totalorder %v313, 16
    %vm330 = vcmp.lt.s32.totalorder %v314, 16
    %vm331 = vcmp.lt.s32.totalorder %v315, 16
    %vm332 = vcmp.lt.s32.totalorder %v316, 16
    %vm333 = vcmp.lt.s32.totalorder %v317, 16
    %vm334 = vcmp.lt.s32.totalorder %v318, 16
    %vm335 = vcmp.lt.s32.totalorder %v319, 16
    %vm336 = vcmp.lt.s32.totalorder %v320, 16
    %vm337 = vcmp.lt.s32.totalorder %v321, 16
    %vm338 = vcmp.lt.s32.totalorder %v322, 16
    %vm339 = vcmp.lt.s32.totalorder %v323, 16
    %vm340 = vcmp.lt.s32.totalorder %v324, 16
    %vm341 = vcmp.ne.s32.totalorder %v309, %v289
    %vm342 = vcmp.ne.s32.totalorder %v310, %v289
    %vm343 = vcmp.ne.s32.totalorder %v311, %v289
    %vm344 = vcmp.ne.s32.totalorder %v312, %v289
    %vm345 = vcmp.ne.s32.totalorder %v313, %v289
    %vm346 = vcmp.ne.s32.totalorder %v314, %v289
    %vm347 = vcmp.ne.s32.totalorder %v315, %v289
    %vm348 = vcmp.ne.s32.totalorder %v316, %v289
    %vm349 = vcmp.ne.s32.totalorder %v317, %v289
    %vm350 = vcmp.ne.s32.totalorder %v318, %v289
    %vm351 = vcmp.ne.s32.totalorder %v319, %v289
    %vm352 = vcmp.ne.s32.totalorder %v320, %v289
    %vm353 = vcmp.ne.s32.totalorder %v321, %v289
    %vm354 = vcmp.ne.s32.totalorder %v322, %v289
    %vm355 = vcmp.ne.s32.totalorder %v323, %v289
    %vm356 = vcmp.ne.s32.totalorder %v324, %v289
    %v357 = vsel %vm325, 1, 0
    %v358 = vsel %vm326, 1, 0
    %v359 = vsel %vm327, 1, 0
    %v360 = vsel %vm328, 1, 0
    %v361 = vsel %vm329, 1, 0
    %v362 = vsel %vm330, 1, 0
    %v363 = vsel %vm331, 1, 0
    %v364 = vsel %vm332, 1, 0
    %v365 = vsel %vm333, 1, 0
    %v366 = vsel %vm334, 1, 0
    %v367 = vsel %vm335, 1, 0
    %v368 = vsel %vm336, 1, 0
    %v369 = vsel %vm337, 1, 0
    %v370 = vsel %vm338, 1, 0
    %v371 = vsel %vm339, 1, 0
    %v372 = vsel %vm340, 1, 0
    %vm373 = vcmp.eq.s32.totalorder %v357, 1
    %vm374 = vcmp.eq.s32.totalorder %v358, 1
    %vm375 = vcmp.eq.s32.totalorder %v359, 1
    %vm376 = vcmp.eq.s32.totalorder %v360, 1
    %vm377 = vcmp.eq.s32.totalorder %v361, 1
    %vm378 = vcmp.eq.s32.totalorder %v362, 1
    %vm379 = vcmp.eq.s32.totalorder %v363, 1
    %vm380 = vcmp.eq.s32.totalorder %v364, 1
    %vm381 = vcmp.eq.s32.totalorder %v365, 1
    %vm382 = vcmp.eq.s32.totalorder %v366, 1
    %vm383 = vcmp.eq.s32.totalorder %v367, 1
    %vm384 = vcmp.eq.s32.totalorder %v368, 1
    %vm385 = vcmp.eq.s32.totalorder %v369, 1
    %vm386 = vcmp.eq.s32.totalorder %v370, 1
    %vm387 = vcmp.eq.s32.totalorder %v371, 1
    %vm388 = vcmp.eq.s32.totalorder %v372, 1
    %vm389 = vmand %vm373, %vm341
    %vm390 = vmand %vm374, %vm342
    %vm391 = vmand %vm375, %vm343
    %vm392 = vmand %vm376, %vm344
    %vm393 = vmand %vm377, %vm345
    %vm394 = vmand %vm378, %vm346
    %vm395 = vmand %vm379, %vm347
    %vm396 = vmand %vm380, %vm348
    %vm397 = vmand %vm381, %vm349
    %vm398 = vmand %vm382, %vm350
    %vm399 = vmand %vm383, %vm351
    %vm400 = vmand %vm384, %vm352
    %vm401 = vmand %vm385, %vm353
    %vm402 = vmand %vm386, %vm354
    %vm403 = vmand %vm387, %vm355
    %vm404 = vmand %vm388, %vm356
    %v405 = vld [vmem:[%s1] sm:$0xff]
    %v406 = vld [vmem:[%s1 + $0x8] sm:$0xff]
    %v407 = vld [vmem:[%s1 + $0x10] sm:$0xff]
    %v408 = vld [vmem:[%s1 + $0x18] sm:$0xff]
    %v409 = vld [vmem:[%s1 + $0x20] sm:$0xff]
    %v410 = vld [vmem:[%s1 + $0x28] sm:$0xff]
    %v411 = vld [vmem:[%s1 + $0x30] sm:$0xff]
    %v412 = vld [vmem:[%s1 + $0x38] sm:$0xff]
    %v413 = vld [vmem:[%s1 + $0x40] sm:$0xff]
    %v414 = vld [vmem:[%s1 + $0x48] sm:$0xff]
    %v415 = vld [vmem:[%s1 + $0x50] sm:$0xff]
    %v416 = vld [vmem:[%s1 + $0x58] sm:$0xff]
    %v417 = vld [vmem:[%s1 + $0x60] sm:$0xff]
    %v418 = vld [vmem:[%s1 + $0x68] sm:$0xff]
    %v419 = vld [vmem:[%s1 + $0x70] sm:$0xff]
    %v420 = vld [vmem:[%s1 + $0x78] sm:$0xff]
    %v421 = vld [vmem:[%s0] sm:$0x1]
    %422 = vset.pattern.permute.xlu0 0
    %423 = vperm.xlu0 %422, %v405
    %v424 = vpop.permute.xlu0 %423
    %425 = vset.pattern.permute.xlu0 0
    %426 = vperm.xlu0 %425, %v406
    %v427 = vpop.permute.xlu0 %426
    %428 = vset.pattern.permute.xlu0 0
    %429 = vperm.xlu0 %428, %v407
    %v430 = vpop.permute.xlu0 %429
    %431 = vset.pattern.permute.xlu0 0
    %432 = vperm.xlu0 %431, %v408
    %v433 = vpop.permute.xlu0 %432
    %434 = vset.pattern.permute.xlu0 0
    %435 = vperm.xlu0 %434, %v409
    %v436 = vpop.permute.xlu0 %435
    %437 = vset.pattern.permute.xlu0 0
    %438 = vperm.xlu0 %437, %v410
    %v439 = vpop.permute.xlu0 %438
    %440 = vset.pattern.permute.xlu0 0
    %441 = vperm.xlu0 %440, %v411
    %v442 = vpop.permute.xlu0 %441
    %443 = vset.pattern.permute.xlu0 0
    %444 = vperm.xlu0 %443, %v412
    %v445 = vpop.permute.xlu0 %444
    %446 = vset.pattern.permute.xlu0 0
    %447 = vperm.xlu0 %446, %v413
    %v448 = vpop.permute.xlu0 %447
    %449 = vset.pattern.permute.xlu0 0
    %450 = vperm.xlu0 %449, %v414
    %v451 = vpop.permute.xlu0 %450
    %452 = vset.pattern.permute.xlu0 0
    %453 = vperm.xlu0 %452, %v415
    %v454 = vpop.permute.xlu0 %453
    %455 = vset.pattern.permute.xlu0 0
    %456 = vperm.xlu0 %455, %v416
    %v457 = vpop.permute.xlu0 %456
    %458 = vset.pattern.permute.xlu0 0
    %459 = vperm.xlu0 %458, %v417
    %v460 = vpop.permute.xlu0 %459
    %461 = vset.pattern.permute.xlu0 0
    %462 = vperm.xlu0 %461, %v418
    %v463 = vpop.permute.xlu0 %462
    %464 = vset.pattern.permute.xlu0 0
    %465 = vperm.xlu0 %464, %v419
    %v466 = vpop.permute.xlu0 %465
    %467 = vset.pattern.permute.xlu0 0
    %468 = vperm.xlu0 %467, %v420
    %v469 = vpop.permute.xlu0 %468
    %v470 = vlaneseq
    %v471 = vshrl.u32 %v470, 7
    %v472 = vsub.s32 0, %v471
    %v473 = vrot.slane %v421, %v472
    %vm474 = vcmp.eq.s32.totalorder %v424, %v473
    %vm475 = vcmp.eq.s32.totalorder %v427, %v473
    %vm476 = vcmp.eq.s32.totalorder %v430, %v473
    %vm477 = vcmp.eq.s32.totalorder %v433, %v473
    %vm478 = vcmp.eq.s32.totalorder %v436, %v473
    %vm479 = vcmp.eq.s32.totalorder %v439, %v473
    %vm480 = vcmp.eq.s32.totalorder %v442, %v473
    %vm481 = vcmp.eq.s32.totalorder %v445, %v473
    %vm482 = vcmp.eq.s32.totalorder %v448, %v473
    %vm483 = vcmp.eq.s32.totalorder %v451, %v473
    %vm484 = vcmp.eq.s32.totalorder %v454, %v473
    %vm485 = vcmp.eq.s32.totalorder %v457, %v473
    %vm486 = vcmp.eq.s32.totalorder %v460, %v473
    %vm487 = vcmp.eq.s32.totalorder %v463, %v473
    %vm488 = vcmp.eq.s32.totalorder %v466, %v473
    %vm489 = vcmp.eq.s32.totalorder %v469, %v473
    %vm490 = vmand %vm389, %vm474
    %vm491 = vmand %vm390, %vm475
    %vm492 = vmand %vm391, %vm476
    %vm493 = vmand %vm392, %vm477
    %vm494 = vmand %vm393, %vm478
    %vm495 = vmand %vm394, %vm479
    %vm496 = vmand %vm395, %vm480
    %vm497 = vmand %vm396, %vm481
    %vm498 = vmand %vm397, %vm482
    %vm499 = vmand %vm398, %vm483
    %vm500 = vmand %vm399, %vm484
    %vm501 = vmand %vm400, %vm485
    %vm502 = vmand %vm401, %vm486
    %vm503 = vmand %vm402, %vm487
    %vm504 = vmand %vm403, %vm488
    %vm505 = vmand %vm404, %vm489
    %v506 = vsel %vm389, %v223, -inf
    %v507 = vsel %vm390, %v226, -inf
    %v508 = vsel %vm391, %v231, -inf
    %v509 = vsel %vm392, %v234, -inf
    %v510 = vsel %vm393, %v239, -inf
    %v511 = vsel %vm394, %v242, -inf
    %v512 = vsel %vm395, %v247, -inf
    %v513 = vsel %vm396, %v250, -inf
    %v514 = vsel %vm397, %v255, -inf
    %v515 = vsel %vm398, %v258, -inf
    %v516 = vsel %vm399, %v263, -inf
    %v517 = vsel %vm400, %v266, -inf
    %v518 = vsel %vm401, %v271, -inf
    %v519 = vsel %vm402, %v274, -inf
    %v520 = vsel %vm403, %v279, -inf
    %v521 = vsel %vm404, %v282, -inf
    %v522 = vld [vmem:[#allocation2] sm:$0x1]
    %v523 = vmax.f32 %v506, %v510
    %v524 = vmax.f32 %v507, %v511
    %v525 = vmax.f32 %v508, %v512
    %v526 = vmax.f32 %v509, %v513
    %v527 = vmax.f32 %v523, %v514
    %v528 = vmax.f32 %v524, %v515
    %v529 = vmax.f32 %v525, %v516
    %v530 = vmax.f32 %v526, %v517
    %v531 = vmax.f32 %v527, %v518
    %v532 = vmax.f32 %v528, %v519
    %v533 = vmax.f32 %v529, %v520
    %v534 = vmax.f32 %v530, %v521
    %v535 = vmax.f32 %v531, %v532
    %v536 = vmax.f32 %v533, %v534
    %v537 = vmax.f32 %v535, %v536
    %v538 = vrot.slane %v537, 4
    %v539 = vmax.f32 %v537, %v538
    %v540 = vrot.slane %v539, 2
    %v541 = vmax.f32 %v539, %v540
    %v542 = vrot.slane %v541, 1
    %v543 = vmax.f32 %v541, %v542
    %v544 = vmax.f32 %v522, %v543
    %v545 = vsub.f32 %v522, %v544
    %v546 = vmul.f32 %v545, 1.442695
    %v547 = vpow.pop %v546
    %v548 = vld [vmem:[#allocation3] sm:$0x1]
    %v549 = vmul.f32 %v547, %v548
    %v551 = vlaneseq
    %v552 = vshrl.u32 %v551, 7
    %v553 = vsub.s32 0, %v552
    %v554 = vrot.slane %v544, %v553
    %v556 = vsub.f32 %v506, %v554
    %v557 = vsub.f32 %v507, %v554
    %v558 = vsub.f32 %v508, %v554
    %v559 = vsub.f32 %v509, %v554
    %v560 = vsub.f32 %v510, %v554
    %v561 = vsub.f32 %v511, %v554
    %v562 = vsub.f32 %v512, %v554
    %v563 = vsub.f32 %v513, %v554
    %v564 = vsub.f32 %v514, %v554
    %v565 = vsub.f32 %v515, %v554
    %v566 = vsub.f32 %v516, %v554
    %v567 = vsub.f32 %v517, %v554
    %v568 = vsub.f32 %v518, %v554
    %v569 = vsub.f32 %v519, %v554
    %v570 = vsub.f32 %v520, %v554
    %v571 = vsub.f32 %v521, %v554
    %v572 = vmul.f32 %v556, 1.442695
    %v573 = vpow.pop %v572
    %v574 = vmul.f32 %v557, 1.442695
    %v575 = vpow.pop %v574
    %v576 = vmul.f32 %v558, 1.442695
    %v577 = vpow.pop %v576
    %v578 = vmul.f32 %v559, 1.442695
    %v579 = vpow.pop %v578
    %v580 = vmul.f32 %v560, 1.442695
    %v581 = vpow.pop %v580
    %v582 = vmul.f32 %v561, 1.442695
    %v583 = vpow.pop %v582
    %v584 = vmul.f32 %v562, 1.442695
    %v585 = vpow.pop %v584
    %v586 = vmul.f32 %v563, 1.442695
    %v587 = vpow.pop %v586
    %v588 = vmul.f32 %v564, 1.442695
    %v589 = vpow.pop %v588
    %v590 = vmul.f32 %v565, 1.442695
    %v591 = vpow.pop %v590
    %v592 = vmul.f32 %v566, 1.442695
    %v593 = vpow.pop %v592
    %v594 = vmul.f32 %v567, 1.442695
    %v595 = vpow.pop %v594
    %v596 = vmul.f32 %v568, 1.442695
    %v597 = vpow.pop %v596
    %v598 = vmul.f32 %v569, 1.442695
    %v599 = vpow.pop %v598
    %v600 = vmul.f32 %v570, 1.442695
    %v601 = vpow.pop %v600
    %v602 = vmul.f32 %v571, 1.442695
    %v603 = vpow.pop %v602
    %v604 = vadd.f32 %v573, %v575
    %v605 = vadd.f32 %v604, %v577
    %v606 = vadd.f32 %v605, %v579
    %v607 = vadd.f32 %v606, %v581
    %v608 = vadd.f32 %v607, %v583
    %v609 = vadd.f32 %v608, %v585
    %v610 = vadd.f32 %v609, %v587
    %v611 = vadd.f32 %v610, %v589
    %v612 = vadd.f32 %v611, %v591
    %v613 = vadd.f32 %v612, %v593
    %v614 = vadd.f32 %v613, %v595
    %v615 = vadd.f32 %v614, %v597
    %v616 = vadd.f32 %v615, %v599
    %v617 = vadd.f32 %v616, %v601
    %v618 = vadd.f32 %v617, %v603
    %v619 = vrot.slane %v618, 4
    %v620 = vadd.f32 %v618, %v619
    %v621 = vrot.slane %v620, 2
    %v622 = vadd.f32 %v620, %v621
    %v623 = vrot.slane %v622, 1
    %v624 = vadd.f32 %v622, %v623
    %v625 = vadd.f32 %v549, %v624
    %626 = vst [vmem:[#allocation3] sm:$0x1] %v625
    %627 = vst [vmem:[#allocation2] sm:$0x1] %v544
    %v628 = vsel %vm490, 1, 0
    %v629 = vsel %vm491, 1, 0
    %v630 = vsel %vm492, 1, 0
    %v631 = vsel %vm493, 1, 0
    %v632 = vsel %vm494, 1, 0
    %v633 = vsel %vm495, 1, 0
    %v634 = vsel %vm496, 1, 0
    %v635 = vsel %vm497, 1, 0
    %v636 = vsel %vm498, 1, 0
    %v637 = vsel %vm499, 1, 0
    %v638 = vsel %vm500, 1, 0
    %v639 = vsel %vm501, 1, 0
    %v640 = vsel %vm502, 1, 0
    %v641 = vsel %vm503, 1, 0
    %v642 = vsel %vm504, 1, 0
    %v643 = vsel %vm505, 1, 0
    %v644 = vcvt.s32.f32 %v628
    %v645 = vcvt.s32.f32 %v629
    %v646 = vcvt.s32.f32 %v630
    %v647 = vcvt.s32.f32 %v631
    %v648 = vcvt.s32.f32 %v632
    %v649 = vcvt.s32.f32 %v633
    %v650 = vcvt.s32.f32 %v634
    %v651 = vcvt.s32.f32 %v635
    %v652 = vcvt.s32.f32 %v636
    %v653 = vcvt.s32.f32 %v637
    %v654 = vcvt.s32.f32 %v638
    %v655 = vcvt.s32.f32 %v639
    %v656 = vcvt.s32.f32 %v640
    %v657 = vcvt.s32.f32 %v641
    %v658 = vcvt.s32.f32 %v642
    %v659 = vcvt.s32.f32 %v643
    %v660 = vld [vmem:[#allocation4] sm:$0x1]
    %v661 = vsel %vm490, %v506, 0.0
    %v662 = vsel %vm491, %v507, 0.0
    %v663 = vsel %vm492, %v508, 0.0
    %v664 = vsel %vm493, %v509, 0.0
    %v665 = vsel %vm494, %v510, 0.0
    %v666 = vsel %vm495, %v511, 0.0
    %v667 = vsel %vm496, %v512, 0.0
    %v668 = vsel %vm497, %v513, 0.0
    %v669 = vsel %vm498, %v514, 0.0
    %v670 = vsel %vm499, %v515, 0.0
    %v671 = vsel %vm500, %v516, 0.0
    %v672 = vsel %vm501, %v517, 0.0
    %v673 = vsel %vm502, %v518, 0.0
    %v674 = vsel %vm503, %v519, 0.0
    %v675 = vsel %vm504, %v520, 0.0
    %v676 = vsel %vm505, %v521, 0.0
    %v677 = vadd.f32 %v661, %v662
    %v678 = vadd.f32 %v677, %v663
    %v679 = vadd.f32 %v678, %v664
    %v680 = vadd.f32 %v679, %v665
    %v681 = vadd.f32 %v680, %v666
    %v682 = vadd.f32 %v681, %v667
    %v683 = vadd.f32 %v682, %v668
    %v684 = vadd.f32 %v683, %v669
    %v685 = vadd.f32 %v684, %v670
    %v686 = vadd.f32 %v685, %v671
    %v687 = vadd.f32 %v686, %v672
    %v688 = vadd.f32 %v687, %v673
    %v689 = vadd.f32 %v688, %v674
    %v690 = vadd.f32 %v689, %v675
    %v691 = vadd.f32 %v690, %v676
    %v692 = vrot.slane %v691, 4
    %v693 = vadd.f32 %v691, %v692
    %v694 = vrot.slane %v693, 2
    %v695 = vadd.f32 %v693, %v694
    %v696 = vrot.slane %v695, 1
    %v697 = vadd.f32 %v695, %v696
    %v698 = vadd.f32 %v660, %v697
    %699 = vst [vmem:[#allocation4] sm:$0x1] %v698
    %v700 = vld [vmem:[#allocation5] sm:$0x1]
    %v701 = vadd.f32 %v644, %v645
    %v702 = vadd.f32 %v701, %v646
    %v703 = vadd.f32 %v702, %v647
    %v704 = vadd.f32 %v703, %v648
    %v705 = vadd.f32 %v704, %v649
    %v706 = vadd.f32 %v705, %v650
    %v707 = vadd.f32 %v706, %v651
    %v708 = vadd.f32 %v707, %v652
    %v709 = vadd.f32 %v708, %v653
    %v710 = vadd.f32 %v709, %v654
    %v711 = vadd.f32 %v710, %v655
    %v712 = vadd.f32 %v711, %v656
    %v713 = vadd.f32 %v712, %v657
    %v714 = vadd.f32 %v713, %v658
    %v715 = vadd.f32 %v714, %v659
    %v716 = vrot.slane %v715, 4
    %v717 = vadd.f32 %v715, %v716
    %v718 = vrot.slane %v717, 2
    %v719 = vadd.f32 %v717, %v718
    %v720 = vrot.slane %v719, 1
    %v721 = vadd.f32 %v719, %v720
    %v722 = vadd.f32 %v700, %v721
    %723 = vst [vmem:[#allocation5] sm:$0x1] %v722
    // Predicated region
    $region22: #{tpu_custom_call.1} parent=1 // pred_check
      %p724 = pneg %p19
    $region23: #{tpu_custom_call.1} parent=1 // pred_check_branch
      %726 = sbr.rel (%p724) target = $region25
    $region24: #{tpu_custom_call.1} parent=1 // pred_region
      %v727 = vld [vmem:[#allocation2] sm:$0x1]
      %v728 = vld [vmem:[#allocation3] sm:$0x1]
      %v729 = vlog2.pop %v728
      %v730 = vmul.f32 %v729, 0.6931472
      %v731 = vadd.f32 %v727, %v730
      %v732 = vld [vmem:[#allocation5] sm:$0x1]
      %v733 = vrcp.pop %v732
      %v734 = vld [vmem:[#allocation4] sm:$0x1]
      %v735 = vmul.f32 %v732, %v731
      %v736 = vsub.f32 %v734, %v735
      %v737 = vmul.f32 %v736, %v733
      %vm738 = vcmp.lt.s32.totalorder %v289, 16
      %v739 = vsel %vm738, %v737, 0.0
      %740 = vst [vmem:[#allocation6] sm:$0x1] %v739
    $region25: #{tpu_custom_call.1} parent=1 // pred_fallthru
      _
    // Predicated region
    $region26: #{tpu_custom_call.1} parent=1 // pred_check
      _
    $region27: #{tpu_custom_call.1} parent=1 // pred_check_branch
      %742 = sbr.rel (0) target = $region29
    $region28: #{tpu_custom_call.1} parent=1 // pred_region
      %s744 = ssub.s32 16, 16
      %745 = vsyncadd [#allocation7], %s744
      %s747 = sshll.u32 [#allocation6], 4
      %s748 = int_to_ptr.vmem [resolvable:$true] %s747
      %750 = dma.vmem_to_hbm [thread:$0]  %s748, 16, %s4, [#allocation7]
    $region29: #{tpu_custom_call.1} parent=1 // pred_fallthru
      _
    // Predicated region
    $region30: #{tpu_custom_call.1} parent=1 // pred_check
      _
    $region31: #{tpu_custom_call.1} parent=1 // pred_check_branch
      %752 = sbr.rel (0) target = $region33
    $region32: #{tpu_custom_call.1} parent=1 // pred_region
      %753 = dma.done [#allocation7], 16
    $region33: #{tpu_custom_call.1} parent=1 // pred_fallthru
      _
    %754 = vsyncpa [#allocation7], 1

</llo_original>
